<compile_context>
chip_gen: v6e
topology: v6e:2x2x1
jax: 0.10.0
libtpu: 0.0.40
codegen_flags: <defaults>
</compile_context>

<pallas_src>
import jax
import jax.numpy as jnp
from jax.experimental import pallas as pl
from jax.experimental.pallas import tpu as pltpu


def _primary_caps_kernel(x_ref, he_ref, seg_ref, alpha_ref, out_ref):
    # x_ref: (TM, H) lane-dense tile; he_ref: (H, K); seg_ref: (H, H)

    # ---- alpha = sigmoid(x @ he) -------------------------------------------
    # Operands in their native dtype (bf16 inputs -> full-rate MXU), f32 accum.
    logits = jnp.dot(x_ref[...], he_ref[...], preferred_element_type=jnp.float32)
    alpha_ref[...] = jax.nn.sigmoid(logits).astype(alpha_ref.dtype)

    # ---- squash, kept in the H = in_caps*in_dim lane layout -----------------
    x = x_ref[...].astype(jnp.float32)
    v2 = x * x                                                        # VPU
    # s2[m, h] = sum_{h' in capsule(h)} x[m, h']^2  (reduce + broadcast on MXU)
    s2 = jnp.dot(v2, seg_ref[...], preferred_element_type=jnp.float32)
    # s2/(1+s2)/sqrt(s2) == sqrt(s2)/(1+s2); reciprocal on the (otherwise idle)
    # EUP slot.  approx=False gives the bit-exact path if ever needed.
    scale = jnp.sqrt(s2) * pl.reciprocal(1.0 + s2, approx=True)
    out_ref[...] = (scale * x).astype(out_ref.dtype)


def _choose_tm(M: int, target: int = 256) -> int:
    """Pick a row-tile: multiple of 8, divides M, <= target, and (when there is
    enough work) small enough to give >= 2 grid steps for v7x megacore."""
    if M % 8 != 0:
        return M  # full-extent block is always legal
    cap = min(target, M if M < 16 else M // 2)
    for tm in range(cap - cap % 8, 7, -8):
        if M % tm == 0:
            return tm
    return M


def primary_caps_forward(x, he, in_caps, in_dim):
    """Returns (out, alpha) exactly like PrimaryCapsLayer.forward(x, he)."""
    B, S, H = x.shape
    assert H == in_caps * in_dim
    K = he.shape[1]
    M = B * S

    # Merging leading dims only -> layout-trivial reshape on TPU.
    x_flat = x.reshape(M, H)

    # Block-diagonal segment matrix: SEG[h, h'] = 1 iff same capsule.
    cap_id = jnp.arange(H, dtype=jnp.int32) // in_dim
    seg = (cap_id[:, None] == cap_id[None, :]).astype(jnp.float32)

    tm = _choose_tm(M)
    grid = (M // tm,)

    # NOTE(v7x): for large production S/K, also tile K and pass
    # pltpu.CompilerParams(vmem_limit_bytes=...) with headroom (64 MiB VMEM,
    # 32 MiB default scoped); at these shapes the default budget is ample.
    alpha_flat, out_flat = pl.pallas_call(
        _primary_caps_kernel,
        out_shape=(
            jax.ShapeDtypeStruct((M, K), x.dtype),   # alpha
            jax.ShapeDtypeStruct((M, H), x.dtype),   # squashed out (lane-dense)
        ),
        grid=grid,
        in_specs=[
            pl.BlockSpec((tm, H), lambda m: (m, 0)),
            pl.BlockSpec((H, K), lambda m: (0, 0)),   # invariant -> DMA'd once
            pl.BlockSpec((H, H), lambda m: (0, 0)),   # invariant -> DMA'd once
        ],
        out_specs=(
            pl.BlockSpec((tm, K), lambda m: (m, 0)),
            pl.BlockSpec((tm, H), lambda m: (m, 0)),
        ),
        compiler_params=pltpu.CompilerParams(
            dimension_semantics=("parallel",),
        ),
    )(x_flat, he, seg)

    alpha = alpha_flat.reshape(B, S, K)
    # Single layout-changing reshape, done once at the JAX level (outside the
    # kernel) so the kernel's stores stay full-lane.
    out = out_flat.reshape(B, S * in_caps, in_dim)
    return out, alpha


def _reference(x, he, in_caps, in_dim):
    B, S, H = x.shape
    alpha = jax.nn.sigmoid(jnp.einsum("bsh,hk->bsk", x, he))
    v = x.reshape(B, S * in_caps, in_dim)
    s2 = jnp.sum(v * v, axis=2, keepdims=True)
    scale = s2 / (1.0 + s2) / jnp.sqrt(s2)
    return scale * v, alpha


if __name__ == "__main__":
    # Small, TPU-friendly shapes consistent with the module:
    B, S = 2, 8
    in_caps, in_dim = 4, 32          # H = 128 (lane-dense)
    H = in_caps * in_dim
    K = 128                          # output dim of the attention projection `he`

    key = jax.random.PRNGKey(0)
    kx, kh = jax.random.split(key)
    x = jax.random.normal(kx, (B, S, H), dtype=jnp.float32)
    he = jax.random.normal(kh, (H, K), dtype=jnp.float32) * 0.1

    out, alpha = primary_caps_forward(x, he, in_caps, in_dim)
    out = jax.block_until_ready(out)
    alpha = jax.block_until_ready(alpha)

    ref_out, ref_alpha = _reference(x, he, in_caps, in_dim)
    assert out.shape == (B, S * in_caps, in_dim)
    assert alpha.shape == (B, S, K)
    assert jnp.allclose(alpha, ref_alpha, atol=1e-5, rtol=1e-5)
    # `out` uses the EUP approximate reciprocal -> slightly looser tolerance.
    assert jnp.allclose(out, ref_out, atol=5e-3, rtol=5e-3)

    print("KERNEL_OK")
</pallas_src>

<mosaic_0001>
module attributes {stable_mosaic.version = 11 : i64} {
  func.func @_primary_caps_kernel(%arg0: i32, %arg1: memref<8x128xf32, #tpu.memory_space<vmem>>, %arg2: memref<128x128xf32, #tpu.memory_space<vmem>>, %arg3: memref<128x128xf32, #tpu.memory_space<vmem>>, %arg4: memref<8x128xf32, #tpu.memory_space<vmem>>, %arg5: memref<8x128xf32, #tpu.memory_space<vmem>>) attributes {dimension_semantics = [#tpu.dimension_semantics<parallel>], iteration_bounds = array<i64: 2>, scalar_prefetch = 0 : i64, scratch_operands = 0 : i64, tpu.core_type = #tpu.core_type<tc>, window_params = [{transform_indices = @transform_0, window_bounds = array<i64: 8, 128>}, {pipeline_mode = #tpu.pipeline_mode<synchronous>, transform_indices = @transform_1, window_bounds = array<i64: 128, 128>}, {pipeline_mode = #tpu.pipeline_mode<synchronous>, transform_indices = @transform_2, window_bounds = array<i64: 128, 128>}, {transform_indices = @transform_3, window_bounds = array<i64: 8, 128>}, {transform_indices = @transform_4, window_bounds = array<i64: 8, 128>}]} {
    %c0 = arith.constant 0 : index
    %c0_0 = arith.constant 0 : index
    %0 = vector.load %arg1[%c0, %c0_0] : memref<8x128xf32, #tpu.memory_space<vmem>>, vector<8x128xf32>
    %c0_1 = arith.constant 0 : index
    %c0_2 = arith.constant 0 : index
    %1 = vector.load %arg2[%c0_1, %c0_2] : memref<128x128xf32, #tpu.memory_space<vmem>>, vector<128x128xf32>
    %cst = arith.constant dense<0.000000e+00> : vector<8x128xf32>
    %2 = tpu.matmul %0, %1, %cst {dimension_numbers = #tpu.dot_dimension_numbers<[1], [0], [0], [1], [0, 0, 1, 1], [], []>} : vector<8x128xf32>, vector<128x128xf32>, vector<8x128xf32> -> vector<8x128xf32>
    %3 = arith.negf %2 : vector<8x128xf32>
    %4 = math.exp %3 : vector<8x128xf32>
    %cst_3 = arith.constant 1.000000e+00 : f32
    %5 = vector.broadcast %cst_3 : f32 to vector<8x128xf32>
    %6 = arith.addf %5, %4 : vector<8x128xf32>
    %7 = arith.divf %5, %6 : vector<8x128xf32>
    %c0_4 = arith.constant 0 : index
    %c0_5 = arith.constant 0 : index
    %8 = vector.load %arg4[%c0_4, %c0_5] : memref<8x128xf32, #tpu.memory_space<vmem>>, vector<8x128xf32>
    tpu.vector_store %arg4[%c0_4, %c0_5], %7 {strides = array<i32>} : memref<8x128xf32, #tpu.memory_space<vmem>>, vector<8x128xf32>,
    %c0_6 = arith.constant 0 : index
    %c0_7 = arith.constant 0 : index
    %9 = vector.load %arg1[%c0_6, %c0_7] : memref<8x128xf32, #tpu.memory_space<vmem>>, vector<8x128xf32>
    %10 = arith.mulf %9, %9 : vector<8x128xf32>
    %c0_8 = arith.constant 0 : index
    %c0_9 = arith.constant 0 : index
    %11 = vector.load %arg3[%c0_8, %c0_9] : memref<128x128xf32, #tpu.memory_space<vmem>>, vector<128x128xf32>
    %cst_10 = arith.constant dense<0.000000e+00> : vector<8x128xf32>
    %12 = tpu.matmul %10, %11, %cst_10 {dimension_numbers = #tpu.dot_dimension_numbers<[1], [0], [0], [1], [0, 0, 1, 1], [], []>} : vector<8x128xf32>, vector<128x128xf32>, vector<8x128xf32> -> vector<8x128xf32>
    %13 = math.sqrt %12 : vector<8x128xf32>
    %cst_11 = arith.constant 1.000000e+00 : f32
    %14 = vector.broadcast %cst_11 : f32 to vector<8x128xf32>
    %15 = arith.addf %14, %12 : vector<8x128xf32>
    %16 = tpu.reciprocal %15 {approx = true} : vector<8x128xf32> -> vector<8x128xf32>
    %17 = arith.mulf %13, %16 : vector<8x128xf32>
    %18 = arith.mulf %17, %9 : vector<8x128xf32>
    %c0_12 = arith.constant 0 : index
    %c0_13 = arith.constant 0 : index
    %19 = vector.load %arg5[%c0_12, %c0_13] : memref<8x128xf32, #tpu.memory_space<vmem>>, vector<8x128xf32>
    tpu.vector_store %arg5[%c0_12, %c0_13], %18 {strides = array<i32>} : memref<8x128xf32, #tpu.memory_space<vmem>>, vector<8x128xf32>,
    return
  }
  func.func @transform_0(%arg0: i32) -> (i32, i32) {
    %c0_i32 = arith.constant 0 : i32
    %c0_i32_0 = arith.constant 0 : i32
    return %arg0, %c0_i32 : i32, i32
  }
  func.func @transform_1(%arg0: i32) -> (i32, i32) {
    %c0_i32 = arith.constant 0 : i32
    %c0_i32_0 = arith.constant 0 : i32
    %c0_i32_1 = arith.constant 0 : i32
    return %c0_i32, %c0_i32_0 : i32, i32
  }
  func.func @transform_2(%arg0: i32) -> (i32, i32) {
    %c0_i32 = arith.constant 0 : i32
    %c0_i32_0 = arith.constant 0 : i32
    %c0_i32_1 = arith.constant 0 : i32
    return %c0_i32, %c0_i32_0 : i32, i32
  }
  func.func @transform_3(%arg0: i32) -> (i32, i32) {
    %c0_i32 = arith.constant 0 : i32
    %c0_i32_0 = arith.constant 0 : i32
    return %arg0, %c0_i32 : i32, i32
  }
  func.func @transform_4(%arg0: i32) -> (i32, i32) {
    %c0_i32 = arith.constant 0 : i32
    %c0_i32_0 = arith.constant 0 : i32
    return %arg0, %c0_i32 : i32, i32
  }
}

</mosaic_0001>

<llo_original>
// kernel: tpu_custom_call.1
$region0: #{tpu_custom_call.1}
  #allocation0 [shape = 'u32[]', space=smem, size = 0x4, offset = 0x4, fixed_abs, tag = 'smem constant byte address 0x4 - core index']
  #allocation1 [shape = 'u32[144,128]{1,0:T(1,128)}', space=vmem, size = 0x12000, scoped, tag = 'internal scratch']
  %s0 = inlined_call_operand.hbm [shape: f32[16,128], index: 0, kind: input, shape index: {}]
  %s1 = inlined_call_operand.hbm [shape: f32[128,128], index: 1, kind: input, shape index: {}]
  %s2 = inlined_call_operand.hbm [shape: f32[128,128], index: 2, kind: input, shape index: {}]
  %s3 = inlined_call_operand.hbm [shape: f32[16,128], index: 3, kind: output, shape index: {0}]
  %s4 = inlined_call_operand.hbm [shape: f32[16,128], index: 4, kind: output, shape index: {1}]
  %5 = xla_tuple %s3, %s4
  %s6 = sld [smem:[#allocation0]]
  $region65: #{tpu_custom_call.1} parent=0
    _
  %s8 = ssub.s32 1, %s6
  %s9 = scalar_select 0, %s8, %s6
  $region1: #{tpu_custom_call.1} parent=0
    #allocation2 [shape = 'u8[8192]{0}', space=vmem, size = 0x2000, scoped, tag = 'input window, operand 0']
    #allocation3 [shape = 's32[2]{0}', space=sflag, size = 0x8, scoped, tag = 'scoped memory for tpu_custom_call.1']
    #allocation4 [shape = 's32[2]{0}', space=sflag, size = 0x8, scoped, tag = 'scoped memory for tpu_custom_call.1']
    #allocation5 [shape = 'u8[65536]{0}', space=vmem, size = 0x10000, scoped, tag = 'input window, operand 1, single buffered']
    #allocation6 [shape = 's32[1]{0}', space=sflag, size = 0x4, scoped, tag = 'scoped memory for tpu_custom_call.1']
    #allocation7 [shape = 'u8[65536]{0}', space=vmem, size = 0x10000, scoped, tag = 'input window, operand 2, single buffered']
    #allocation8 [shape = 'u8[8192]{0}', space=vmem, size = 0x2000, scoped, tag = 'output window, operand 0']
    #allocation9 [shape = 'u8[8192]{0}', space=vmem, size = 0x2000, scoped, tag = 'output window, operand 1']
    #allocation10 [shape = 's32[2]{0}', space=sflag, size = 0x8, scoped, tag = 'scoped memory for tpu_custom_call.1']
    %10 = vsyncpa [#allocation3], 0
    %s11 = scalar_lea.sflag [#allocation3], 1
    %12 = vsyncpa %s11, 0
    %13 = vsyncpa [#allocation6], 0
    %14 = vsyncpa [#allocation4], 0
    %s15 = scalar_lea.sflag [#allocation4], 1
    %16 = vsyncpa %s15, 0
    %17 = vsyncpa [#allocation10], 0
    %s18 = scalar_lea.sflag [#allocation10], 1
    %19 = vsyncpa %s18, 0
    loop: start=0, step=1, limit=4
    $region2: #{tpu_custom_call.1} parent=1 // loop_pre_header
      _
    $region3: #{tpu_custom_call.1} parent=1 // loop_header
      %s21 = sphi 0, %s25
      %p22 = scmp.ge.s32.totalorder %s21, 4
      %s31 = sphi 0, %s33
      %s34 = sphi 0, %s31
      %s35 = sphi 0, %s34
      %s51 = sphi 0, %s35
      %s55 = sphi 0, %s55
      %s57 = sphi 0, %s55
      %s58 = sphi 0, %s57
      %s72 = sphi 0, %s58
      %s76 = sphi 0, %s76
      %s78 = sphi 0, %s76
      %s79 = sphi 0, %s78
      %s93 = sphi 0, %s79
      %s99 = sphi 0, %s101
      %s102 = sphi 0, %s99
      %s103 = sphi 0, %s102
      %s119 = sphi 0, %s103
      %s125 = sphi 0, %s127
      %s128 = sphi 0, %s125
      %s129 = sphi 0, %s128
      %s145 = sphi 0, %s129
    $region4: #{tpu_custom_call.1} parent=1 // loop_header_branch
      %24 = sbr.rel (%p22) target = $region8
    $region5: #{tpu_custom_call.1} parent=1 // loop_body
      %s26 = ssub.s32 %s21, 1
      %s27 = ssub.s32 %s21, 2
      %s28 = sadd.s32 %s21, 1
      %s29 = ssub.s32 %s21, %s28
      %p30 = scmp.eq.s32.totalorder %s29, 0
      %s32 = sadd.s32 %s31, 1
      %s33 = scalar_select %p30, %s31, %s32
      %p36 = pneg %p30
      %p37 = scmp.eq.s32.totalorder %s21, 1
      %p38 = por %p36, %p37
      %p39 = scmp.ne.s32.totalorder %s31, %s34
      %p40 = scmp.eq.s32.totalorder %s21, 0
      %p41 = por %p39, %p40
      %p42 = scmp.ne.s32.totalorder %s31, %s34
      %p43 = scmp.eq.s32.totalorder %s26, 1
      %p44 = por %p42, %p43
      %p45 = scmp.ne.s32.totalorder %s34, %s35
      %p46 = scmp.eq.s32.totalorder %s26, 0
      %p47 = por %p45, %p46
      %p48 = scmp.ne.s32.totalorder %s34, %s35
      %p49 = scmp.eq.s32.totalorder %s27, 1
      %p50 = por %p48, %p49
      %p52 = scmp.ne.s32.totalorder %s35, %s51
      %p53 = scmp.eq.s32.totalorder %s27, 0
      %p54 = por %p52, %p53
      %s56 = sadd.s32 %s55, 1
      %p59 = scmp.eq.s32.totalorder %s21, 1
      %p60 = scmp.ne.s32.totalorder %s55, %s57
      %p61 = scmp.eq.s32.totalorder %s21, 0
      %p62 = por %p60, %p61
      %p63 = scmp.ne.s32.totalorder %s55, %s57
      %p64 = scmp.eq.s32.totalorder %s26, 1
      %p65 = por %p63, %p64
      %p66 = scmp.ne.s32.totalorder %s57, %s58
      %p67 = scmp.eq.s32.totalorder %s26, 0
      %p68 = por %p66, %p67
      %p69 = scmp.ne.s32.totalorder %s57, %s58
      %p70 = scmp.eq.s32.totalorder %s27, 1
      %p71 = por %p69, %p70
      %p73 = scmp.ne.s32.totalorder %s58, %s72
      %p74 = scmp.eq.s32.totalorder %s27, 0
      %p75 = por %p73, %p74
      %s77 = sadd.s32 %s76, 1
      %p80 = scmp.eq.s32.totalorder %s21, 1
      %p81 = scmp.ne.s32.totalorder %s76, %s78
      %p82 = scmp.eq.s32.totalorder %s21, 0
      %p83 = por %p81, %p82
      %p84 = scmp.ne.s32.totalorder %s76, %s78
      %p85 = scmp.eq.s32.totalorder %s26, 1
      %p86 = por %p84, %p85
      %p87 = scmp.ne.s32.totalorder %s78, %s79
      %p88 = scmp.eq.s32.totalorder %s26, 0
      %p89 = por %p87, %p88
      %p90 = scmp.ne.s32.totalorder %s78, %s79
      %p91 = scmp.eq.s32.totalorder %s27, 1
      %p92 = por %p90, %p91
      %p94 = scmp.ne.s32.totalorder %s79, %s93
      %p95 = scmp.eq.s32.totalorder %s27, 0
      %p96 = por %p94, %p95
      %s97 = ssub.s32 %s21, %s28
      %p98 = scmp.eq.s32.totalorder %s97, 0
      %s100 = sadd.s32 %s99, 1
      %s101 = scalar_select %p98, %s99, %s100
      %p104 = pneg %p98
      %p105 = scmp.eq.s32.totalorder %s21, 1
      %p106 = por %p104, %p105
      %p107 = scmp.ne.s32.totalorder %s99, %s102
      %p108 = scmp.eq.s32.totalorder %s21, 0
      %p109 = por %p107, %p108
      %p110 = scmp.ne.s32.totalorder %s99, %s102
      %p111 = scmp.eq.s32.totalorder %s26, 1
      %p112 = por %p110, %p111
      %p113 = scmp.ne.s32.totalorder %s102, %s103
      %p114 = scmp.eq.s32.totalorder %s26, 0
      %p115 = por %p113, %p114
      %p116 = scmp.ne.s32.totalorder %s102, %s103
      %p117 = scmp.eq.s32.totalorder %s27, 1
      %p118 = por %p116, %p117
      %p120 = scmp.ne.s32.totalorder %s103, %s119
      %p121 = scmp.eq.s32.totalorder %s27, 0
      %p122 = por %p120, %p121
      %s123 = ssub.s32 %s21, %s28
      %p124 = scmp.eq.s32.totalorder %s123, 0
      %s126 = sadd.s32 %s125, 1
      %s127 = scalar_select %p124, %s125, %s126
      %p130 = pneg %p124
      %p131 = scmp.eq.s32.totalorder %s21, 1
      %p132 = por %p130, %p131
      %p133 = scmp.ne.s32.totalorder %s125, %s128
      %p134 = scmp.eq.s32.totalorder %s21, 0
      %p135 = por %p133, %p134
      %p136 = scmp.ne.s32.totalorder %s125, %s128
      %p137 = scmp.eq.s32.totalorder %s26, 1
      %p138 = por %p136, %p137
      %p139 = scmp.ne.s32.totalorder %s128, %s129
      %p140 = scmp.eq.s32.totalorder %s26, 0
      %p141 = por %p139, %p140
      %p142 = scmp.ne.s32.totalorder %s128, %s129
      %p143 = scmp.eq.s32.totalorder %s27, 1
      %p144 = por %p142, %p143
      %p146 = scmp.ne.s32.totalorder %s129, %s145
      %p147 = scmp.eq.s32.totalorder %s27, 0
      %p148 = por %p146, %p147
      %p149 = scmp.le.s32.totalorder 1, %s21
      %p150 = scmp.lt.s32.totalorder %s21, 3
      %p151 = pnand %p149, %p150
      %p152 = pneg %p151
      // Predicated region
      $region9: #{tpu_custom_call.1} parent=5 // pred_check
        _
      $region10: #{tpu_custom_call.1} parent=5 // pred_check_branch
        %154 = sbr.rel (%p151) target = $region12
      $region11: #{tpu_custom_call.1} parent=5 // pred_region
        %s155 = ssub.s32 %s21, 1
        // Predicated region
        $region13: #{tpu_custom_call.1} parent=11 // pred_check
          %p156 = pneg %p68
        $region14: #{tpu_custom_call.1} parent=11 // pred_check_branch
          %158 = sbr.rel (%p156) target = $region16
        $region15: #{tpu_custom_call.1} parent=11 // pred_region
          %s160 = ssub.s32 2048, 2048
          %161 = vsyncadd [#allocation6], %s160
          %s162 = sshll.u32 [#allocation5], 4
          %s163 = int_to_ptr.vmem [resolvable:$true] %s162
          %168 = dma.hbm_to_vmem [thread:$0]  %s1, 2048, %s163, [#allocation6], 128, 128, 8
        $region16: #{tpu_custom_call.1} parent=11 // pred_fallthru
          _
        // Predicated region
        $region17: #{tpu_custom_call.1} parent=11 // pred_check
          %p169 = pneg %p89
        $region18: #{tpu_custom_call.1} parent=11 // pred_check_branch
          %171 = sbr.rel (%p169) target = $region20
        $region19: #{tpu_custom_call.1} parent=11 // pred_region
          %s173 = ssub.s32 2048, 2048
          %174 = vsyncadd [#allocation6], %s173
          %s175 = sshll.u32 [#allocation7], 4
          %s176 = int_to_ptr.vmem [resolvable:$true] %s175
          %181 = dma.hbm_to_vmem [thread:$0]  %s2, 2048, %s176, [#allocation6], 128, 128, 8
        $region20: #{tpu_custom_call.1} parent=11 // pred_fallthru
          _
      $region12: #{tpu_custom_call.1} parent=5 // pred_fallthru
        _
      %p182 = scmp.lt.s32.totalorder %s21, 2
      // Predicated region
      $region21: #{tpu_custom_call.1} parent=5 // pred_check
        %p183 = pneg %p182
      $region22: #{tpu_custom_call.1} parent=5 // pred_check_branch
        %185 = sbr.rel (%p183) target = $region24
      $region23: #{tpu_custom_call.1} parent=5 // pred_region
        // Predicated region
        $region25: #{tpu_custom_call.1} parent=23 // pred_check
          %p186 = pneg %p41
        $region26: #{tpu_custom_call.1} parent=23 // pred_check_branch
          %188 = sbr.rel (%p186) target = $region28
        $region27: #{tpu_custom_call.1} parent=23 // pred_region
          %s189 = sand.u32 %s31, 1
          %s190 = scalar_lea.sflag [#allocation3], %s189
          %s191 = sand.u32 %s31, 1
          %s192 = smul.addr %s191, 8
          %s193 = scalar_lea.vmem [#allocation2], %s192
          %s195 = ssub.s32 128, 128
          %196 = vsyncadd %s190, %s195
          %s197 = smul.addr %s21, 128
          %s198 = scalar_lea.hbm %s0, %s197
          %s200 = sshll.u32 %s193, 4
          %s201 = int_to_ptr.vmem [resolvable:$true] %s200
          %203 = dma.hbm_to_vmem [thread:$0]  %s198, 128, %s201, %s190
        $region28: #{tpu_custom_call.1} parent=23 // pred_fallthru
          _
      $region24: #{tpu_custom_call.1} parent=5 // pred_fallthru
        _
      %p204 = scmp.le.s32.totalorder 1, %s21
      %p205 = scmp.lt.s32.totalorder %s21, 3
      %p206 = pnand %p204, %p205
      %p207 = pneg %p206
      // Predicated region
      $region29: #{tpu_custom_call.1} parent=5 // pred_check
        _
      $region30: #{tpu_custom_call.1} parent=5 // pred_check_branch
        %209 = sbr.rel (%p206) target = $region32
      $region31: #{tpu_custom_call.1} parent=5 // pred_region
        %s210 = ssub.s32 %s21, 1
        %s211 = sand.u32 %s34, 1
        %s212 = scalar_lea.sflag [#allocation3], %s211
        %s213 = sand.u32 %s34, 1
        %s214 = smul.addr %s213, 8
        %s215 = scalar_lea.vmem [#allocation2], %s214
        // Predicated region
        $region33: #{tpu_custom_call.1} parent=31 // pred_check
          %p216 = pneg %p47
        $region34: #{tpu_custom_call.1} parent=31 // pred_check_branch
          %218 = sbr.rel (%p216) target = $region36
        $region35: #{tpu_custom_call.1} parent=31 // pred_region
          %219 = dma.done %s212, 128
        $region36: #{tpu_custom_call.1} parent=31 // pred_fallthru
          _
        // Predicated region
        $region37: #{tpu_custom_call.1} parent=31 // pred_check
          %p220 = pneg %p68
        $region38: #{tpu_custom_call.1} parent=31 // pred_check_branch
          %222 = sbr.rel (%p220) target = $region40
        $region39: #{tpu_custom_call.1} parent=31 // pred_region
          %223 = dma.done [#allocation6], 2048
        $region40: #{tpu_custom_call.1} parent=31 // pred_fallthru
          _
        // Predicated region
        $region41: #{tpu_custom_call.1} parent=31 // pred_check
          %p224 = pneg %p89
        $region42: #{tpu_custom_call.1} parent=31 // pred_check_branch
          %226 = sbr.rel (%p224) target = $region44
        $region43: #{tpu_custom_call.1} parent=31 // pred_region
          %227 = dma.done [#allocation6], 2048
        $region44: #{tpu_custom_call.1} parent=31 // pred_fallthru
          _
        %s228 = sand.u32 %s34, 1
        %s229 = scalar_lea.sflag [#allocation3], %s228
        %s230 = sand.u32 %s34, 1
        %s231 = smul.addr %s230, 8
        %s232 = scalar_lea.vmem [#allocation2], %s231
        %p233 = pneg %p47
        %p234 = pneg %p44
        %p235 = pneg %p68
        %p236 = pneg %p65
        %p237 = pneg %p89
        %p238 = pneg %p86
        %p239 = pneg %p115
        %p240 = pneg %p112
        %s241 = sand.u32 %s102, 1
        %s242 = scalar_lea.sflag [#allocation4], %s241
        %s243 = sand.u32 %s102, 1
        %s244 = smul.addr %s243, 8
        %s245 = scalar_lea.vmem [#allocation8], %s244
        %p246 = pneg %p141
        %p247 = pneg %p138
        %s248 = sand.u32 %s128, 1
        %s249 = scalar_lea.sflag [#allocation10], %s248
        %s250 = sand.u32 %s128, 1
        %s251 = smul.addr %s250, 8
        %s252 = scalar_lea.vmem [#allocation9], %s251
        %v253 = vld [vmem:[%s215] sm:$0xff]
        %v254 = vld [vmem:[#allocation5] sm:$0xff]
        %v255 = vld [vmem:[#allocation5 + $0x8] sm:$0xff]
        %v256 = vld [vmem:[#allocation5 + $0x10] sm:$0xff]
        %v257 = vld [vmem:[#allocation5 + $0x18] sm:$0xff]
        %v258 = vld [vmem:[#allocation5 + $0x20] sm:$0xff]
        %v259 = vld [vmem:[#allocation5 + $0x28] sm:$0xff]
        %v260 = vld [vmem:[#allocation5 + $0x30] sm:$0xff]
        %v261 = vld [vmem:[#allocation5 + $0x38] sm:$0xff]
        %v262 = vld [vmem:[#allocation5 + $0x40] sm:$0xff]
        %v263 = vld [vmem:[#allocation5 + $0x48] sm:$0xff]
        %v264 = vld [vmem:[#allocation5 + $0x50] sm:$0xff]
        %v265 = vld [vmem:[#allocation5 + $0x58] sm:$0xff]
        %v266 = vld [vmem:[#allocation5 + $0x60] sm:$0xff]
        %v267 = vld [vmem:[#allocation5 + $0x68] sm:$0xff]
        %v268 = vld [vmem:[#allocation5 + $0x70] sm:$0xff]
        %v269 = vld [vmem:[#allocation5 + $0x78] sm:$0xff]
        %270 = vmatprep.subr.mxu0 0.0
        %271 = vmatpush1.msra.mxu0 %v269
        %272 = vmatprep.subr.mxu0 0.0
        %273 = vmatpush1.msra.mxu0 %v268
        %274 = vmatprep.subr.mxu0 0.0
        %275 = vmatpush1.msra.mxu0 %v267
        %276 = vmatprep.subr.mxu0 0.0
        %277 = vmatpush1.msra.mxu0 %v266
        %278 = vmatprep.subr.mxu0 0.0
        %279 = vmatpush1.msra.mxu0 %v265
        %280 = vmatprep.subr.mxu0 0.0
        %281 = vmatpush1.msra.mxu0 %v264
        %282 = vmatprep.subr.mxu0 0.0
        %283 = vmatpush1.msra.mxu0 %v263
        %284 = vmatprep.subr.mxu0 0.0
        %285 = vmatpush1.msra.mxu0 %v262
        %286 = vmatprep.subr.mxu0 0.0
        %287 = vmatpush1.msra.mxu0 %v261
        %288 = vmatprep.subr.mxu0 0.0
        %289 = vmatpush1.msra.mxu0 %v260
        %290 = vmatprep.subr.mxu0 0.0
        %291 = vmatpush1.msra.mxu0 %v259
        %292 = vmatprep.subr.mxu0 0.0
        %293 = vmatpush1.msra.mxu0 %v258
        %294 = vmatprep.subr.mxu0 0.0
        %295 = vmatpush1.msra.mxu0 %v257
        %296 = vmatprep.subr.mxu0 0.0
        %297 = vmatpush1.msra.mxu0 %v256
        %298 = vmatprep.subr.mxu0 0.0
        %299 = vmatpush1.msra.mxu0 %v255
        %300 = vmatprep.subr.mxu0 0.0
        %301 = vmatpush1.msra.mxu0 %v254
        %302 = vmatprep.subr.mxu0 0.0
        %303 = vmatpush2.msra.mxu0 0.0
        %304 = vmatprep.subr.mxu0 0.0
        %305 = vmatpush2.msra.mxu0 0.0
        %306 = vmatprep.subr.mxu0 0.0
        %307 = vmatpush2.msra.mxu0 0.0
        %308 = vmatprep.subr.mxu0 0.0
        %309 = vmatpush2.msra.mxu0 0.0
        %310 = vmatprep.subr.mxu0 0.0
        %311 = vmatpush2.msra.mxu0 0.0
        %312 = vmatprep.subr.mxu0 0.0
        %313 = vmatpush2.msra.mxu0 0.0
        %314 = vmatprep.subr.mxu0 0.0
        %315 = vmatpush2.msra.mxu0 0.0
        %316 = vmatprep.subr.mxu0 0.0
        %317 = vmatpush2.msra.mxu0 0.0
        %318 = vmatprep.subr.mxu0 0.0
        %319 = vmatpush2.msra.mxu0 0.0
        %320 = vmatprep.subr.mxu0 0.0
        %321 = vmatpush2.msra.mxu0 0.0
        %322 = vmatprep.subr.mxu0 0.0
        %323 = vmatpush2.msra.mxu0 0.0
        %324 = vmatprep.subr.mxu0 0.0
        %325 = vmatpush2.msra.mxu0 0.0
        %326 = vmatprep.subr.mxu0 0.0
        %327 = vmatpush2.msra.mxu0 0.0
        %328 = vmatprep.subr.mxu0 0.0
        %329 = vmatpush2.msra.mxu0 0.0
        %330 = vmatprep.subr.mxu0 0.0
        %331 = vmatpush2.msra.mxu0 0.0
        %332 = vmatprep.subr.mxu0 0.0
        %333 = vmatpush2.msra.mxu0 0.0
        %334 = vmatprep.mubr.f32.mxu0 0.0
        %335 = vmatmul.mubr.f32.gmra.mxu0 %v253
        %v336 = vpop.f32.mrf.mxu0
        %v337 = vadd.f32 0.0, %v336
        %v338 = vpop.f32.mrf.mxu0
        %339 = vdwg.mxu0
        %v340 = vxor.u32 %v337, 2147483648
        %v341 = vmul.f32 %v340, 1.442695
        %v342 = vpow.pop %v341
        %v343 = vadd.f32 %v342, 1.0
        %v344 = vrcp.pop %v343
        %v345 = vmul.f32 1.0, %v344
        %346 = vst [vmem:[%s245] sm:$0xff] %v345
        %v347 = vld [vmem:[%s215] sm:$0xff]
        %v348 = vmul.f32 %v347, %v347
        %v349 = vld [vmem:[#allocation7] sm:$0xff]
        %v350 = vld [vmem:[#allocation7 + $0x8] sm:$0xff]
        %v351 = vld [vmem:[#allocation7 + $0x10] sm:$0xff]
        %v352 = vld [vmem:[#allocation7 + $0x18] sm:$0xff]
        %v353 = vld [vmem:[#allocation7 + $0x20] sm:$0xff]
        %v354 = vld [vmem:[#allocation7 + $0x28] sm:$0xff]
        %v355 = vld [vmem:[#allocation7 + $0x30] sm:$0xff]
        %v356 = vld [vmem:[#allocation7 + $0x38] sm:$0xff]
        %v357 = vld [vmem:[#allocation7 + $0x40] sm:$0xff]
        %v358 = vld [vmem:[#allocation7 + $0x48] sm:$0xff]
        %v359 = vld [vmem:[#allocation7 + $0x50] sm:$0xff]
        %v360 = vld [vmem:[#allocation7 + $0x58] sm:$0xff]
        %v361 = vld [vmem:[#allocation7 + $0x60] sm:$0xff]
        %v362 = vld [vmem:[#allocation7 + $0x68] sm:$0xff]
        %v363 = vld [vmem:[#allocation7 + $0x70] sm:$0xff]
        %v364 = vld [vmem:[#allocation7 + $0x78] sm:$0xff]
        %365 = vmatprep.subr.mxu0 0.0
        %366 = vmatpush1.msra.mxu0 %v364
        %367 = vmatprep.subr.mxu0 0.0
        %368 = vmatpush1.msra.mxu0 %v363
        %369 = vmatprep.subr.mxu0 0.0
        %370 = vmatpush1.msra.mxu0 %v362
        %371 = vmatprep.subr.mxu0 0.0
        %372 = vmatpush1.msra.mxu0 %v361
        %373 = vmatprep.subr.mxu0 0.0
        %374 = vmatpush1.msra.mxu0 %v360
        %375 = vmatprep.subr.mxu0 0.0
        %376 = vmatpush1.msra.mxu0 %v359
        %377 = vmatprep.subr.mxu0 0.0
        %378 = vmatpush1.msra.mxu0 %v358
        %379 = vmatprep.subr.mxu0 0.0
        %380 = vmatpush1.msra.mxu0 %v357
        %381 = vmatprep.subr.mxu0 0.0
        %382 = vmatpush1.msra.mxu0 %v356
        %383 = vmatprep.subr.mxu0 0.0
        %384 = vmatpush1.msra.mxu0 %v355
        %385 = vmatprep.subr.mxu0 0.0
        %386 = vmatpush1.msra.mxu0 %v354
        %387 = vmatprep.subr.mxu0 0.0
        %388 = vmatpush1.msra.mxu0 %v353
        %389 = vmatprep.subr.mxu0 0.0
        %390 = vmatpush1.msra.mxu0 %v352
        %391 = vmatprep.subr.mxu0 0.0
        %392 = vmatpush1.msra.mxu0 %v351
        %393 = vmatprep.subr.mxu0 0.0
        %394 = vmatpush1.msra.mxu0 %v350
        %395 = vmatprep.subr.mxu0 0.0
        %396 = vmatpush1.msra.mxu0 %v349
        %397 = vmatprep.subr.mxu0 0.0
        %398 = vmatpush2.msra.mxu0 0.0
        %399 = vmatprep.subr.mxu0 0.0
        %400 = vmatpush2.msra.mxu0 0.0
        %401 = vmatprep.subr.mxu0 0.0
        %402 = vmatpush2.msra.mxu0 0.0
        %403 = vmatprep.subr.mxu0 0.0
        %404 = vmatpush2.msra.mxu0 0.0
        %405 = vmatprep.subr.mxu0 0.0
        %406 = vmatpush2.msra.mxu0 0.0
        %407 = vmatprep.subr.mxu0 0.0
        %408 = vmatpush2.msra.mxu0 0.0
        %409 = vmatprep.subr.mxu0 0.0
        %410 = vmatpush2.msra.mxu0 0.0
        %411 = vmatprep.subr.mxu0 0.0
        %412 = vmatpush2.msra.mxu0 0.0
        %413 = vmatprep.subr.mxu0 0.0
        %414 = vmatpush2.msra.mxu0 0.0
        %415 = vmatprep.subr.mxu0 0.0
        %416 = vmatpush2.msra.mxu0 0.0
        %417 = vmatprep.subr.mxu0 0.0
        %418 = vmatpush2.msra.mxu0 0.0
        %419 = vmatprep.subr.mxu0 0.0
        %420 = vmatpush2.msra.mxu0 0.0
        %421 = vmatprep.subr.mxu0 0.0
        %422 = vmatpush2.msra.mxu0 0.0
        %423 = vmatprep.subr.mxu0 0.0
        %424 = vmatpush2.msra.mxu0 0.0
        %425 = vmatprep.subr.mxu0 0.0
        %426 = vmatpush2.msra.mxu0 0.0
        %427 = vmatprep.subr.mxu0 0.0
        %428 = vmatpush2.msra.mxu0 0.0
        %429 = vmatprep.mubr.f32.mxu0 0.0
        %430 = vmatmul.mubr.f32.gmra.mxu0 %v348
        %v431 = vpop.f32.mrf.mxu0
        %v432 = vadd.f32 0.0, %v431
        %v433 = vpop.f32.mrf.mxu0
        %434 = vdwg.mxu0
        %v435 = vrsqrt.pop %v432
        %v436 = vmul.f32 %v432, %v435
        %vm437 = vcmp.eq.f32.partialorder %v432, inf
        %v438 = vsel %vm437, %v432, %v436
        %vm439 = vcmp.eq.f32.partialorder %v432, 0.0
        %v440 = vand.u32 %v432, 2147483648
        %v441 = vsel %vm439, %v440, %v438
        %v442 = vadd.f32 %v432, 1.0
        %v443 = vrcp.pop %v442
        %v444 = vmul.f32 %v441, %v443
        %v445 = vmul.f32 %v444, %v347
        %446 = vst [vmem:[%s252] sm:$0xff] %v445
        %s447 = sand.u32 %s102, 1
        %s448 = scalar_lea.sflag [#allocation4], %s447
        %s449 = sand.u32 %s102, 1
        %s450 = smul.addr %s449, 8
        %s451 = scalar_lea.vmem [#allocation8], %s450
        %s452 = sand.u32 %s128, 1
        %s453 = scalar_lea.sflag [#allocation10], %s452
        %s454 = sand.u32 %s128, 1
        %s455 = smul.addr %s454, 8
        %s456 = scalar_lea.vmem [#allocation9], %s455
        // Predicated region
        $region45: #{tpu_custom_call.1} parent=31 // pred_check
          %p457 = pneg %p112
        $region46: #{tpu_custom_call.1} parent=31 // pred_check_branch
          %459 = sbr.rel (%p457) target = $region48
        $region47: #{tpu_custom_call.1} parent=31 // pred_region
          %s461 = ssub.s32 128, 128
          %462 = vsyncadd %s448, %s461
          %s463 = smul.addr %s26, 128
          %s464 = scalar_lea.hbm %s3, %s463
          %s466 = sshll.u32 %s451, 4
          %s467 = int_to_ptr.vmem [resolvable:$true] %s466
          %469 = dma.vmem_to_hbm [thread:$0]  %s467, 128, %s464, %s448
        $region48: #{tpu_custom_call.1} parent=31 // pred_fallthru
          _
        // Predicated region
        $region49: #{tpu_custom_call.1} parent=31 // pred_check
          %p470 = pneg %p138
        $region50: #{tpu_custom_call.1} parent=31 // pred_check_branch
          %472 = sbr.rel (%p470) target = $region52
        $region51: #{tpu_custom_call.1} parent=31 // pred_region
          %s474 = ssub.s32 128, 128
          %475 = vsyncadd %s453, %s474
          %s476 = smul.addr %s26, 128
          %s477 = scalar_lea.hbm %s4, %s476
          %s479 = sshll.u32 %s456, 4
          %s480 = int_to_ptr.vmem [resolvable:$true] %s479
          %482 = dma.vmem_to_hbm [thread:$0]  %s480, 128, %s477, %s453
        $region52: #{tpu_custom_call.1} parent=31 // pred_fallthru
          _
      $region32: #{tpu_custom_call.1} parent=5 // pred_fallthru
        _
      %p483 = scmp.le.s32.totalorder 2, %s21
      // Predicated region
      $region53: #{tpu_custom_call.1} parent=5 // pred_check
        %p484 = pneg %p483
      $region54: #{tpu_custom_call.1} parent=5 // pred_check_branch
        %486 = sbr.rel (%p484) target = $region56
      $region55: #{tpu_custom_call.1} parent=5 // pred_region
        %s487 = ssub.s32 %s21, 2
        // Predicated region
        $region57: #{tpu_custom_call.1} parent=55 // pred_check
          %p488 = pneg %p118
        $region58: #{tpu_custom_call.1} parent=55 // pred_check_branch
          %490 = sbr.rel (%p488) target = $region60
        $region59: #{tpu_custom_call.1} parent=55 // pred_region
          %s491 = sand.u32 %s103, 1
          %s492 = scalar_lea.sflag [#allocation4], %s491
          %s493 = sand.u32 %s103, 1
          %s494 = smul.addr %s493, 8
          %s495 = scalar_lea.vmem [#allocation8], %s494
          %496 = dma.done %s492, 128
        $region60: #{tpu_custom_call.1} parent=55 // pred_fallthru
          _
        // Predicated region
        $region61: #{tpu_custom_call.1} parent=55 // pred_check
          %p497 = pneg %p144
        $region62: #{tpu_custom_call.1} parent=55 // pred_check_branch
          %499 = sbr.rel (%p497) target = $region64
        $region63: #{tpu_custom_call.1} parent=55 // pred_region
          %s500 = sand.u32 %s129, 1
          %s501 = scalar_lea.sflag [#allocation10], %s500
          %s502 = sand.u32 %s129, 1
          %s503 = smul.addr %s502, 8
          %s504 = scalar_lea.vmem [#allocation9], %s503
          %505 = dma.done %s501, 128
        $region64: #{tpu_custom_call.1} parent=55 // pred_fallthru
          _
      $region56: #{tpu_custom_call.1} parent=5 // pred_fallthru
        _
    $region6: #{tpu_custom_call.1} parent=1 // loop_footer
      %s25 = sadd.s32 1, %s21
    $region7: #{tpu_custom_call.1} parent=1 // loop_footer_branch
      %20 = sbr.rel target = $region3
    $region8: #{tpu_custom_call.1} parent=1 // loop_exit
      _
    %506 = vsyncpa [#allocation3], 1
    %s507 = scalar_lea.sflag [#allocation3], 1
    %508 = vsyncpa %s507, 1
    %509 = vsyncpa [#allocation6], 1
    %510 = vsyncpa [#allocation4], 1
    %s511 = scalar_lea.sflag [#allocation4], 1
    %512 = vsyncpa %s511, 1
    %513 = vsyncpa [#allocation10], 1
    %s514 = scalar_lea.sflag [#allocation10], 1
    %515 = vsyncpa %s514, 1

</llo_original>
